<compile_context>
chip_gen: v6e
topology: v6e:2x2x1
jax: 0.10.0
libtpu: 0.0.40
codegen_flags: <defaults>
</compile_context>

<pallas_src>
import functools

import jax
import jax.numpy as jnp
from jax.experimental import pallas as pl
from jax.experimental.pallas import tpu as pltpu

_LANE = 128
_MAX_TILE_ROWS = 4096      # (4096, 128) f32 = 2 MiB per input block
_ROW_ALIGN = 32            # satisfies (8,128)/(16,128)/(32,128) min tiles


def _round_up(a, b):
    return ((a + b - 1) // b) * b


def _dice_partial_kernel(x_ref, t_ref, out_ref, *, tile_rows, n_valid,
                         nb_total, nbpc):
    """Accumulate [sum(sig*t), sum(sig), sum(t)] partials into out_ref.

    x_ref, t_ref : VMEM (tile_rows, 128) blocks, native dtype (f32/bf16/int8)
    out_ref      : VMEM (1, 3, 8, 128) f32, resident across the reduction axis
    """
    p = pl.program_id(0)           # parallel chunk (maps to a TC on v7x)
    j = pl.program_id(1)           # reduction step within the chunk

    @pl.when(j == 0)
    def _():
        out_ref[...] = jnp.zeros_like(out_ref)

    # Logical block index.  It can exceed the number of real blocks for the
    # last parallel chunk; those "ghost" iterations are skipped entirely.
    block_idx = p * nbpc + j
    block_end = (block_idx + 1) * tile_rows * _LANE
    is_real = block_idx < nb_total
    is_full = jnp.logical_and(is_real, block_end <= n_valid)
    is_partial = jnp.logical_and(is_real, block_end > n_valid)

    def _sigmoid(x):
        # 1 EUP push + 2 cheap VPU ops (vs exp + divide).
        return 0.5 * jnp.tanh(0.5 * x) + 0.5

    def _accumulate(s, t):
        def vsum(v):  # (tile_rows, 128) -> (8, 128) VPU-only partial sum
            return jnp.sum(v.reshape(-1, 8, _LANE), axis=0)
        out_ref[0, 0] = out_ref[0, 0] + vsum(s * t)   # intersection partial
        out_ref[0, 1] = out_ref[0, 1] + vsum(s)       # sum(sigmoid(x)) partial
        out_ref[0, 2] = out_ref[0, 2] + vsum(t)       # sum(targets) partial

    @pl.when(is_full)
    def _():
        # Fast path: no mask temporaries, no selects.
        x = x_ref[...].astype(jnp.float32)   # cast in VMEM, hidden under DMA
        t = t_ref[...].astype(jnp.float32)
        _accumulate(_sigmoid(x), t)

    @pl.when(is_partial)
    def _():
        # Slow path (at most one block per chunk): mask by flat element index
        # to drop the lane pad, the rows past the array end, and any garbage
        # in the un-DMA'd part of a partial block.
        x = x_ref[...].astype(jnp.float32)
        t = t_ref[...].astype(jnp.float32)
        row = jax.lax.broadcasted_iota(jnp.int32, (tile_rows, _LANE), 0)
        lane = jax.lax.broadcasted_iota(jnp.int32, (tile_rows, _LANE), 1)
        flat_idx = (block_idx * tile_rows + row) * _LANE + lane
        mask = flat_idx < n_valid
        s = jnp.where(mask, _sigmoid(x), 0.0)
        t = jnp.where(mask, t, 0.0)
        _accumulate(s, t)


def dice_loss(inputs, targets, smooth=1.0):
    """Pallas equivalent of DiceLoss.forward(inputs, targets, smooth)."""
    x = inputs.reshape(-1)
    t = targets.reshape(-1)

    # Keep native f32/bf16 (cast happens in-kernel).  Bool targets (binary
    # masks) are streamed as int8 => 1 B/elem of HBM traffic.
    if x.dtype not in (jnp.float32, jnp.bfloat16):
        x = x.astype(jnp.float32)
    if t.dtype == jnp.bool_:
        t = t.astype(jnp.int8)
    elif t.dtype not in (jnp.float32, jnp.bfloat16, jnp.int8):
        t = t.astype(jnp.float32)

    n = int(x.shape[0])
    n_pad = _round_up(n, _LANE)
    if n_pad != n:
        # <=127 pad elements; masked in-kernel so the pad value is irrelevant.
        # TODO(synk): this pad is still a full-tensor copy HLO; a zero-copy
        # unaligned path needs manual DMA of the ragged tail (pl.ANY).
        x = jnp.pad(x, (0, n_pad - n))
        t = jnp.pad(t, (0, n_pad - n))

    rows = n_pad // _LANE

    # Two independent reduction chunks -> one per TensorCore on v7x; on
    # single-core chips this is just a cheap outer loop.  Pick tile_rows so
    # both chunks get an equal block count (load balance), capped at
    # _MAX_TILE_ROWS (2 MiB f32 blocks; bigger buys <~1% and eats v7x VMEM).
    num_par = 2 if rows > _ROW_ALIGN else 1
    rows_per_chunk = pl.cdiv(rows, num_par)
    blocks_per_chunk_min = pl.cdiv(rows_per_chunk, _MAX_TILE_ROWS)
    tile_rows = _round_up(pl.cdiv(rows_per_chunk, blocks_per_chunk_min),
                          _ROW_ALIGN)
    nb_total = pl.cdiv(rows, tile_rows)
    nbpc = pl.cdiv(nb_total, num_par)

    x2 = x.reshape(rows, _LANE)
    t2 = t.reshape(rows, _LANE)

    def in_map(p, j):
        # Clamp so the DMA never targets a block past the end of the array;
        # the kernel skips/masks those ghost iterations.
        return (jnp.minimum(p * nbpc + j, nb_total - 1), 0)

    kernel = functools.partial(_dice_partial_kernel, tile_rows=tile_rows,
                               n_valid=n, nb_total=nb_total, nbpc=nbpc)

    partial = pl.pallas_call(
        kernel,
        out_shape=jax.ShapeDtypeStruct((num_par, 3, 8, _LANE), jnp.float32),
        grid=(num_par, nbpc),
        in_specs=[
            pl.BlockSpec((tile_rows, _LANE), in_map),
            pl.BlockSpec((tile_rows, _LANE), in_map),
        ],
        out_specs=pl.BlockSpec((1, 3, 8, _LANE), lambda p, j: (p, 0, 0, 0)),
        compiler_params=pltpu.CompilerParams(
            dimension_semantics=("parallel", "arbitrary"),
            vmem_limit_bytes=48 << 20),
    )(x2, t2)

    # Tiny epilogue: one cross-lane reduce per quantity + scalar dice math.
    sums = jnp.sum(partial, axis=(0, 2, 3))            # (3,)
    inter, s_sum, t_sum = sums[0], sums[1], sums[2]
    dice = (2.0 * inter + smooth) / (s_sum + t_sum + smooth)
    return 1.0 - dice


def _dice_loss_ref(inputs, targets, smooth=1.0):
    x = jax.nn.sigmoid(inputs.astype(jnp.float32)).reshape(-1)
    t = targets.astype(jnp.float32).reshape(-1)
    inter = jnp.sum(x * t)
    dice = (2.0 * inter + smooth) / (jnp.sum(x) + jnp.sum(t) + smooth)
    return 1.0 - dice


if __name__ == "__main__":
    key = jax.random.PRNGKey(0)

    # (shape, bool_targets): covers the single-partial-block masked path, the
    # unaligned (n % 128 != 0) path, the int8-targets fast path, and the
    # multi-step two-chunk reduction path.
    cases = [
        ((2, 4, 16, 16), False),
        ((2, 3, 61, 75), False),
        ((2, 4, 64, 96), True),
        ((2, 3, 512, 360), False),
    ]
    for shape, bool_targets in cases:
        key, k1, k2 = jax.random.split(key, 3)
        inputs = jax.random.normal(k1, shape, dtype=jnp.float32)
        tgt = jax.random.uniform(k2, shape) > 0.5
        targets = tgt if bool_targets else tgt.astype(jnp.float32)

        loss = dice_loss(inputs, targets, smooth=1.0)
        jax.block_until_ready(loss)

        ref = _dice_loss_ref(inputs, targets, smooth=1.0)
        assert jnp.allclose(loss, ref, rtol=1e-5, atol=1e-5), (shape, loss, ref)

    print("KERNEL_OK")
</pallas_src>

<mosaic_0001>
module attributes {stable_mosaic.version = 11 : i64} {
  func.func @_dice_partial_kernel(%arg0: i32, %arg1: i32, %arg2: memref<32x128xf32, #tpu.memory_space<vmem>>, %arg3: memref<32x128xf32, #tpu.memory_space<vmem>>, %arg4: memref<1x3x8x128xf32, #tpu.memory_space<vmem>>) attributes {dimension_semantics = [#tpu.dimension_semantics<parallel>, #tpu.dimension_semantics<arbitrary>], iteration_bounds = array<i64: 1, 1>, scalar_prefetch = 0 : i64, scratch_operands = 0 : i64, tpu.core_type = #tpu.core_type<tc>, window_params = [{transform_indices = @transform_0, window_bounds = array<i64: 32, 128>}, {transform_indices = @transform_1, window_bounds = array<i64: 32, 128>}, {transform_indices = @transform_2, window_bounds = array<i64: 1, 3, 8, 128>}]} {
    %c0_i32 = arith.constant 0 : i32
    %0 = arith.cmpi eq, %arg1, %c0_i32 : i32
    %1 = arith.extui %0 : i1 to i32
    %c0_i32_0 = arith.constant 0 : i32
    %2 = arith.cmpi ne, %1, %c0_i32_0 : i32
    scf.if %2 {
      %cst = arith.constant 0.000000e+00 : f32
      %17 = vector.broadcast %cst : f32 to vector<1x3x8x128xf32>
      %c0 = arith.constant 0 : index
      %c0_6 = arith.constant 0 : index
      %c0_7 = arith.constant 0 : index
      %c0_8 = arith.constant 0 : index
      %18 = vector.load %arg4[%c0, %c0_6, %c0_7, %c0_8] : memref<1x3x8x128xf32, #tpu.memory_space<vmem>>, vector<1x3x8x128xf32>
      tpu.vector_store %arg4[%c0, %c0_6, %c0_7, %c0_8], %17 {strides = array<i32>} : memref<1x3x8x128xf32, #tpu.memory_space<vmem>>, vector<1x3x8x128xf32>,
    } else {
    }
    %c1_i32 = arith.constant 1 : i32
    %3 = arith.muli %arg0, %c1_i32 : i32
    %4 = arith.addi %3, %arg1 : i32
    %c1_i32_1 = arith.constant 1 : i32
    %5 = arith.addi %4, %c1_i32_1 : i32
    %c32_i32 = arith.constant 32 : i32
    %6 = arith.muli %5, %c32_i32 : i32
    %c128_i32 = arith.constant 128 : i32
    %7 = arith.muli %6, %c128_i32 : i32
    %c1_i32_2 = arith.constant 1 : i32
    %8 = arith.cmpi slt, %4, %c1_i32_2 : i32
    %c2048_i32 = arith.constant 2048 : i32
    %9 = arith.cmpi sle, %7, %c2048_i32 : i32
    %10 = arith.andi %8, %9 : i1
    %c2048_i32_3 = arith.constant 2048 : i32
    %11 = arith.cmpi sgt, %7, %c2048_i32_3 : i32
    %12 = arith.andi %8, %11 : i1
    %13 = arith.extui %10 : i1 to i32
    %c0_i32_4 = arith.constant 0 : i32
    %14 = arith.cmpi ne, %13, %c0_i32_4 : i32
    scf.if %14 {
      %c0 = arith.constant 0 : index
      %c0_6 = arith.constant 0 : index
      %17 = vector.load %arg2[%c0, %c0_6] : memref<32x128xf32, #tpu.memory_space<vmem>>, vector<32x128xf32>
      %c0_7 = arith.constant 0 : index
      %c0_8 = arith.constant 0 : index
      %18 = vector.load %arg3[%c0_7, %c0_8] : memref<32x128xf32, #tpu.memory_space<vmem>>, vector<32x128xf32>
      %cst = arith.constant 5.000000e-01 : f32
      %19 = vector.broadcast %cst : f32 to vector<32x128xf32>
      %20 = arith.mulf %19, %17 : vector<32x128xf32>
      %21 = math.tanh %20 : vector<32x128xf32>
      %cst_9 = arith.constant 5.000000e-01 : f32
      %22 = vector.broadcast %cst_9 : f32 to vector<32x128xf32>
      %23 = arith.mulf %22, %21 : vector<32x128xf32>
      %cst_10 = arith.constant 5.000000e-01 : f32
      %24 = vector.broadcast %cst_10 : f32 to vector<32x128xf32>
      %25 = arith.addf %23, %24 : vector<32x128xf32>
      %c0_11 = arith.constant 0 : index
      %c0_12 = arith.constant 0 : index
      %c0_13 = arith.constant 0 : index
      %c0_14 = arith.constant 0 : index
      %26 = vector.load %arg4[%c0_11, %c0_12, %c0_13, %c0_14] : memref<1x3x8x128xf32, #tpu.memory_space<vmem>>, vector<1x1x8x128xf32>
      %27 = vector.shape_cast %26 : vector<1x1x8x128xf32> to vector<8x128xf32>
      %28 = arith.mulf %25, %18 : vector<32x128xf32>
      %29 = vector.shape_cast %28 : vector<32x128xf32> to vector<4x8x128xf32>
      %cst_15 = arith.constant dense<0.000000e+00> : vector<8x128xf32>
      %30 = vector.multi_reduction <add>, %29, %cst_15 [0] : vector<4x8x128xf32> to vector<8x128xf32>
      %31 = arith.addf %27, %30 : vector<8x128xf32>
      %c0_16 = arith.constant 0 : index
      %c0_17 = arith.constant 0 : index
      %c0_18 = arith.constant 0 : index
      %c0_19 = arith.constant 0 : index
      %32 = vector.load %arg4[%c0_16, %c0_17, %c0_18, %c0_19] : memref<1x3x8x128xf32, #tpu.memory_space<vmem>>, vector<1x1x8x128xf32>
      %33 = vector.shape_cast %32 : vector<1x1x8x128xf32> to vector<8x128xf32>
      %34 = vector.shape_cast %31 : vector<8x128xf32> to vector<1x1x8x128xf32>
      tpu.vector_store %arg4[%c0_16, %c0_17, %c0_18, %c0_19], %34 {strides = array<i32>} : memref<1x3x8x128xf32, #tpu.memory_space<vmem>>, vector<1x1x8x128xf32>,
      %c0_20 = arith.constant 0 : index
      %c1 = arith.constant 1 : index
      %c0_21 = arith.constant 0 : index
      %c0_22 = arith.constant 0 : index
      %35 = vector.load %arg4[%c0_20, %c1, %c0_21, %c0_22] : memref<1x3x8x128xf32, #tpu.memory_space<vmem>>, vector<1x1x8x128xf32>
      %36 = vector.shape_cast %35 : vector<1x1x8x128xf32> to vector<8x128xf32>
      %37 = vector.shape_cast %25 : vector<32x128xf32> to vector<4x8x128xf32>
      %cst_23 = arith.constant dense<0.000000e+00> : vector<8x128xf32>
      %38 = vector.multi_reduction <add>, %37, %cst_23 [0] : vector<4x8x128xf32> to vector<8x128xf32>
      %39 = arith.addf %36, %38 : vector<8x128xf32>
      %c0_24 = arith.constant 0 : index
      %c1_25 = arith.constant 1 : index
      %c0_26 = arith.constant 0 : index
      %c0_27 = arith.constant 0 : index
      %40 = vector.load %arg4[%c0_24, %c1_25, %c0_26, %c0_27] : memref<1x3x8x128xf32, #tpu.memory_space<vmem>>, vector<1x1x8x128xf32>
      %41 = vector.shape_cast %40 : vector<1x1x8x128xf32> to vector<8x128xf32>
      %42 = vector.shape_cast %39 : vector<8x128xf32> to vector<1x1x8x128xf32>
      tpu.vector_store %arg4[%c0_24, %c1_25, %c0_26, %c0_27], %42 {strides = array<i32>} : memref<1x3x8x128xf32, #tpu.memory_space<vmem>>, vector<1x1x8x128xf32>,
      %c0_28 = arith.constant 0 : index
      %c2 = arith.constant 2 : index
      %c0_29 = arith.constant 0 : index
      %c0_30 = arith.constant 0 : index
      %43 = vector.load %arg4[%c0_28, %c2, %c0_29, %c0_30] : memref<1x3x8x128xf32, #tpu.memory_space<vmem>>, vector<1x1x8x128xf32>
      %44 = vector.shape_cast %43 : vector<1x1x8x128xf32> to vector<8x128xf32>
      %45 = vector.shape_cast %18 : vector<32x128xf32> to vector<4x8x128xf32>
      %cst_31 = arith.constant dense<0.000000e+00> : vector<8x128xf32>
      %46 = vector.multi_reduction <add>, %45, %cst_31 [0] : vector<4x8x128xf32> to vector<8x128xf32>
      %47 = arith.addf %44, %46 : vector<8x128xf32>
      %c0_32 = arith.constant 0 : index
      %c2_33 = arith.constant 2 : index
      %c0_34 = arith.constant 0 : index
      %c0_35 = arith.constant 0 : index
      %48 = vector.load %arg4[%c0_32, %c2_33, %c0_34, %c0_35] : memref<1x3x8x128xf32, #tpu.memory_space<vmem>>, vector<1x1x8x128xf32>
      %49 = vector.shape_cast %48 : vector<1x1x8x128xf32> to vector<8x128xf32>
      %50 = vector.shape_cast %47 : vector<8x128xf32> to vector<1x1x8x128xf32>
      tpu.vector_store %arg4[%c0_32, %c2_33, %c0_34, %c0_35], %50 {strides = array<i32>} : memref<1x3x8x128xf32, #tpu.memory_space<vmem>>, vector<1x1x8x128xf32>,
    } else {
    }
    %15 = arith.extui %12 : i1 to i32
    %c0_i32_5 = arith.constant 0 : i32
    %16 = arith.cmpi ne, %15, %c0_i32_5 : i32
    scf.if %16 {
      %c0 = arith.constant 0 : index
      %c0_6 = arith.constant 0 : index
      %17 = vector.load %arg2[%c0, %c0_6] : memref<32x128xf32, #tpu.memory_space<vmem>>, vector<32x128xf32>
      %c0_7 = arith.constant 0 : index
      %c0_8 = arith.constant 0 : index
      %18 = vector.load %arg3[%c0_7, %c0_8] : memref<32x128xf32, #tpu.memory_space<vmem>>, vector<32x128xf32>
      %19 = tpu.iota {dimensions = array<i32: 0>} : vector<32x128xi32>
      %20 = tpu.iota {dimensions = array<i32: 1>} : vector<32x128xi32>
      %c32_i32_9 = arith.constant 32 : i32
      %21 = arith.muli %4, %c32_i32_9 : i32
      %22 = vector.broadcast %21 : i32 to vector<32x128xi32>
      %23 = arith.addi %22, %19 : vector<32x128xi32>
      %c128_i32_10 = arith.constant 128 : i32
      %24 = vector.broadcast %c128_i32_10 : i32 to vector<32x128xi32>
      %25 = arith.muli %23, %24 : vector<32x128xi32>
      %26 = arith.addi %25, %20 : vector<32x128xi32>
      %c2048_i32_11 = arith.constant 2048 : i32
      %27 = vector.broadcast %c2048_i32_11 : i32 to vector<32x128xi32>
      %28 = arith.cmpi slt, %26, %27 : vector<32x128xi32>
      %cst = arith.constant 5.000000e-01 : f32
      %29 = vector.broadcast %cst : f32 to vector<32x128xf32>
      %30 = arith.mulf %29, %17 : vector<32x128xf32>
      %31 = math.tanh %30 : vector<32x128xf32>
      %cst_12 = arith.constant 5.000000e-01 : f32
      %32 = vector.broadcast %cst_12 : f32 to vector<32x128xf32>
      %33 = arith.mulf %32, %31 : vector<32x128xf32>
      %cst_13 = arith.constant 5.000000e-01 : f32
      %34 = vector.broadcast %cst_13 : f32 to vector<32x128xf32>
      %35 = arith.addf %33, %34 : vector<32x128xf32>
      %cst_14 = arith.constant 0.000000e+00 : f32
      %36 = vector.broadcast %cst_14 : f32 to vector<32x128xf32>
      %37 = arith.select %28, %35, %36 : vector<32x128xi1>, vector<32x128xf32>
      %cst_15 = arith.constant 0.000000e+00 : f32
      %38 = vector.broadcast %cst_15 : f32 to vector<32x128xf32>
      %39 = arith.select %28, %18, %38 : vector<32x128xi1>, vector<32x128xf32>
      %c0_16 = arith.constant 0 : index
      %c0_17 = arith.constant 0 : index
      %c0_18 = arith.constant 0 : index
      %c0_19 = arith.constant 0 : index
      %40 = vector.load %arg4[%c0_16, %c0_17, %c0_18, %c0_19] : memref<1x3x8x128xf32, #tpu.memory_space<vmem>>, vector<1x1x8x128xf32>
      %41 = vector.shape_cast %40 : vector<1x1x8x128xf32> to vector<8x128xf32>
      %42 = arith.mulf %37, %39 : vector<32x128xf32>
      %43 = vector.shape_cast %42 : vector<32x128xf32> to vector<4x8x128xf32>
      %cst_20 = arith.constant dense<0.000000e+00> : vector<8x128xf32>
      %44 = vector.multi_reduction <add>, %43, %cst_20 [0] : vector<4x8x128xf32> to vector<8x128xf32>
      %45 = arith.addf %41, %44 : vector<8x128xf32>
      %c0_21 = arith.constant 0 : index
      %c0_22 = arith.constant 0 : index
      %c0_23 = arith.constant 0 : index
      %c0_24 = arith.constant 0 : index
      %46 = vector.load %arg4[%c0_21, %c0_22, %c0_23, %c0_24] : memref<1x3x8x128xf32, #tpu.memory_space<vmem>>, vector<1x1x8x128xf32>
      %47 = vector.shape_cast %46 : vector<1x1x8x128xf32> to vector<8x128xf32>
      %48 = vector.shape_cast %45 : vector<8x128xf32> to vector<1x1x8x128xf32>
      tpu.vector_store %arg4[%c0_21, %c0_22, %c0_23, %c0_24], %48 {strides = array<i32>} : memref<1x3x8x128xf32, #tpu.memory_space<vmem>>, vector<1x1x8x128xf32>,
      %c0_25 = arith.constant 0 : index
      %c1 = arith.constant 1 : index
      %c0_26 = arith.constant 0 : index
      %c0_27 = arith.constant 0 : index
      %49 = vector.load %arg4[%c0_25, %c1, %c0_26, %c0_27] : memref<1x3x8x128xf32, #tpu.memory_space<vmem>>, vector<1x1x8x128xf32>
      %50 = vector.shape_cast %49 : vector<1x1x8x128xf32> to vector<8x128xf32>
      %51 = vector.shape_cast %37 : vector<32x128xf32> to vector<4x8x128xf32>
      %cst_28 = arith.constant dense<0.000000e+00> : vector<8x128xf32>
      %52 = vector.multi_reduction <add>, %51, %cst_28 [0] : vector<4x8x128xf32> to vector<8x128xf32>
      %53 = arith.addf %50, %52 : vector<8x128xf32>
      %c0_29 = arith.constant 0 : index
      %c1_30 = arith.constant 1 : index
      %c0_31 = arith.constant 0 : index
      %c0_32 = arith.constant 0 : index
      %54 = vector.load %arg4[%c0_29, %c1_30, %c0_31, %c0_32] : memref<1x3x8x128xf32, #tpu.memory_space<vmem>>, vector<1x1x8x128xf32>
      %55 = vector.shape_cast %54 : vector<1x1x8x128xf32> to vector<8x128xf32>
      %56 = vector.shape_cast %53 : vector<8x128xf32> to vector<1x1x8x128xf32>
      tpu.vector_store %arg4[%c0_29, %c1_30, %c0_31, %c0_32], %56 {strides = array<i32>} : memref<1x3x8x128xf32, #tpu.memory_space<vmem>>, vector<1x1x8x128xf32>,
      %c0_33 = arith.constant 0 : index
      %c2 = arith.constant 2 : index
      %c0_34 = arith.constant 0 : index
      %c0_35 = arith.constant 0 : index
      %57 = vector.load %arg4[%c0_33, %c2, %c0_34, %c0_35] : memref<1x3x8x128xf32, #tpu.memory_space<vmem>>, vector<1x1x8x128xf32>
      %58 = vector.shape_cast %57 : vector<1x1x8x128xf32> to vector<8x128xf32>
      %59 = vector.shape_cast %39 : vector<32x128xf32> to vector<4x8x128xf32>
      %cst_36 = arith.constant dense<0.000000e+00> : vector<8x128xf32>
      %60 = vector.multi_reduction <add>, %59, %cst_36 [0] : vector<4x8x128xf32> to vector<8x128xf32>
      %61 = arith.addf %58, %60 : vector<8x128xf32>
      %c0_37 = arith.constant 0 : index
      %c2_38 = arith.constant 2 : index
      %c0_39 = arith.constant 0 : index
      %c0_40 = arith.constant 0 : index
      %62 = vector.load %arg4[%c0_37, %c2_38, %c0_39, %c0_40] : memref<1x3x8x128xf32, #tpu.memory_space<vmem>>, vector<1x1x8x128xf32>
      %63 = vector.shape_cast %62 : vector<1x1x8x128xf32> to vector<8x128xf32>
      %64 = vector.shape_cast %61 : vector<8x128xf32> to vector<1x1x8x128xf32>
      tpu.vector_store %arg4[%c0_37, %c2_38, %c0_39, %c0_40], %64 {strides = array<i32>} : memref<1x3x8x128xf32, #tpu.memory_space<vmem>>, vector<1x1x8x128xf32>,
    } else {
    }
    return
  }
  func.func @transform_0(%arg0: i32, %arg1: i32) -> (i32, i32) {
    %c1_i32 = arith.constant 1 : i32
    %0 = arith.muli %arg0, %c1_i32 : i32
    %1 = arith.addi %0, %arg1 : i32
    %c0_i32 = arith.constant 0 : i32
    %2 = arith.minsi %1, %c0_i32 : i32
    %c0_i32_0 = arith.constant 0 : i32
    %c0_i32_1 = arith.constant 0 : i32
    return %2, %c0_i32_0 : i32, i32
  }
  func.func @transform_1(%arg0: i32, %arg1: i32) -> (i32, i32) {
    %c1_i32 = arith.constant 1 : i32
    %0 = arith.muli %arg0, %c1_i32 : i32
    %1 = arith.addi %0, %arg1 : i32
    %c0_i32 = arith.constant 0 : i32
    %2 = arith.minsi %1, %c0_i32 : i32
    %c0_i32_0 = arith.constant 0 : i32
    %c0_i32_1 = arith.constant 0 : i32
    return %2, %c0_i32_0 : i32, i32
  }
  func.func @transform_2(%arg0: i32, %arg1: i32) -> (i32, i32, i32, i32) {
    %c0_i32 = arith.constant 0 : i32
    %c0_i32_0 = arith.constant 0 : i32
    %c0_i32_1 = arith.constant 0 : i32
    %c0_i32_2 = arith.constant 0 : i32
    return %arg0, %c0_i32, %c0_i32_0, %c0_i32_1 : i32, i32, i32, i32
  }
}

</mosaic_0001>

<llo_original>
// kernel: tpu_custom_call.1
$region0: #{tpu_custom_call.1}
  #allocation0 [shape = 'u32[]', space=smem, size = 0x4, offset = 0x4, fixed_abs, tag = 'smem constant byte address 0x4 - core index']
  #allocation1 [shape = 'u32[144,128]{1,0:T(1,128)}', space=vmem, size = 0x12000, scoped, tag = 'internal scratch']
  %s0 = inlined_call_operand.hbm [shape: f32[16,128], index: 0, kind: input, shape index: {}]
  %s1 = inlined_call_operand.hbm [shape: f32[16,128], index: 1, kind: input, shape index: {}]
  %s2 = inlined_call_operand.hbm [shape: f32[1,3,8,128], index: 2, kind: output, shape index: {}]
  %s3 = sld [smem:[#allocation0]]
  $region38: #{tpu_custom_call.1} parent=0
    _
  %s5 = ssub.s32 1, %s3
  %s6 = scalar_select 0, %s5, %s3
  $region1: #{tpu_custom_call.1} parent=0
    #allocation2 [shape = 'u8[16384]{0}', space=vmem, size = 0x4000, scoped, tag = 'input window, operand 0, single buffered']
    #allocation3 [shape = 's32[1]{0}', space=sflag, size = 0x4, scoped, tag = 'scoped memory for tpu_custom_call.1']
    #allocation4 [shape = 's32[1]{0}', space=sflag, size = 0x4, scoped, tag = 'scoped memory for tpu_custom_call.1']
    #allocation5 [shape = 'u8[16384]{0}', space=vmem, size = 0x4000, scoped, tag = 'input window, operand 1, single buffered']
    #allocation6 [shape = 's32[1]{0}', space=sflag, size = 0x4, scoped, tag = 'scoped memory for tpu_custom_call.1']
    #allocation7 [shape = 'u8[12288]{0}', space=vmem, size = 0x3000, scoped, tag = 'output window, operand 0, single buffered']
    %7 = vsyncpa [#allocation3], 0
    %8 = vsyncpa [#allocation6], 0
    %9 = vsyncpa [#allocation4], 0
    // Predicated region
    $region2: #{tpu_custom_call.1} parent=1 // pred_check
      _
    $region3: #{tpu_custom_call.1} parent=1 // pred_check_branch
      %11 = sbr.rel (0) target = $region5
    $region4: #{tpu_custom_call.1} parent=1 // pred_region
      %s12 = sadd.s32 0, 0
      %p13 = scmp.lt.s32.totalorder %s12, 0
      %s14 = scalar_select %p13, %s12, 0
      %s15 = smul.u32 4, %s14
      %s16 = ssub.s32 2, %s15
      %s17 = smul.u32 128, %s16
      %s19 = ssub.s32 512, %s17
      %20 = vsyncadd [#allocation3], %s19
      %p21 = scmp.ne.s32.totalorder 0, %s17
      %s22 = smul.addr %s15, 128
      %s23 = scalar_lea.hbm %s0, %s22
      %s24 = smul.u32 8, %s16
      %s25 = sshll.u32 [#allocation2], 4
      %s26 = int_to_ptr.vmem [resolvable:$true] %s25
      %s27 = sshll.u32 %s24, 4
      %31 = dma.hbm_to_vmem [thread:$0]  (%p21), %s23, %s27, %s26, [#allocation3], 128, 128, 8
    $region5: #{tpu_custom_call.1} parent=1 // pred_fallthru
      _
    // Predicated region
    $region6: #{tpu_custom_call.1} parent=1 // pred_check
      _
    $region7: #{tpu_custom_call.1} parent=1 // pred_check_branch
      %33 = sbr.rel (0) target = $region9
    $region8: #{tpu_custom_call.1} parent=1 // pred_region
      %s34 = sadd.s32 0, 0
      %p35 = scmp.lt.s32.totalorder %s34, 0
      %s36 = scalar_select %p35, %s34, 0
      %s37 = smul.u32 4, %s36
      %s38 = ssub.s32 2, %s37
      %s39 = smul.u32 128, %s38
      %s41 = ssub.s32 512, %s39
      %42 = vsyncadd [#allocation6], %s41
      %p43 = scmp.ne.s32.totalorder 0, %s39
      %s44 = smul.addr %s37, 128
      %s45 = scalar_lea.hbm %s1, %s44
      %s46 = smul.u32 8, %s38
      %s47 = sshll.u32 [#allocation5], 4
      %s48 = int_to_ptr.vmem [resolvable:$true] %s47
      %s49 = sshll.u32 %s46, 4
      %53 = dma.hbm_to_vmem [thread:$0]  (%p43), %s45, %s49, %s48, [#allocation6], 128, 128, 8
    $region9: #{tpu_custom_call.1} parent=1 // pred_fallthru
      _
    // Predicated region
    $region10: #{tpu_custom_call.1} parent=1 // pred_check
      _
    $region11: #{tpu_custom_call.1} parent=1 // pred_check_branch
      %55 = sbr.rel (0) target = $region13
    $region12: #{tpu_custom_call.1} parent=1 // pred_region
      %56 = dma.done [#allocation3], 512
    $region13: #{tpu_custom_call.1} parent=1 // pred_fallthru
      _
    // Predicated region
    $region14: #{tpu_custom_call.1} parent=1 // pred_check
      _
    $region15: #{tpu_custom_call.1} parent=1 // pred_check_branch
      %58 = sbr.rel (0) target = $region17
    $region16: #{tpu_custom_call.1} parent=1 // pred_region
      %59 = dma.done [#allocation6], 512
    $region17: #{tpu_custom_call.1} parent=1 // pred_fallthru
      _
    %s60 = sadd.s32 0, 0
    %p61 = scmp.lt.s32.totalorder %s60, 0
    %s62 = scalar_select %p61, %s60, 0
    %s63 = smul.u32 4, %s62
    %s64 = ssub.s32 2, %s63
    %s65 = smul.u32 128, %s64
    %s66 = sadd.s32 0, 0
    %p67 = scmp.lt.s32.totalorder %s66, 0
    %s68 = scalar_select %p67, %s66, 0
    %s69 = smul.u32 4, %s68
    %s70 = ssub.s32 2, %s69
    %s71 = smul.u32 128, %s70
    %p72 = scmp.eq.s32.totalorder 0, 0
    // Predicated region
    $region18: #{tpu_custom_call.1} parent=1 // pred_check
      %p73 = pneg %p72
    $region19: #{tpu_custom_call.1} parent=1 // pred_check_branch
      %75 = sbr.rel (%p73) target = $region21
    $region20: #{tpu_custom_call.1} parent=1 // pred_region
      %76 = vst [vmem:[#allocation7] sm:$0xff] 0.0
      %77 = vst [vmem:[#allocation7 + $0x8] sm:$0xff] 0.0
      %78 = vst [vmem:[#allocation7 + $0x10] sm:$0xff] 0.0
    $region21: #{tpu_custom_call.1} parent=1 // pred_fallthru
      _
    %s79 = sadd.s32 0, 0
    %s80 = sadd.s32 %s79, 1
    %s81 = smul.u32 %s80, 4096
    %p82 = scmp.lt.s32.totalorder %s79, 1
    %p83 = scmp.le.s32.totalorder %s81, 2048
    %p84 = pnand %p82, %p83
    %p85 = pneg %p84
    %p86 = scmp.gt.s32.totalorder %s81, 2048
    %p87 = pnand %p82, %p86
    %p88 = pneg %p87
    // Predicated region
    $region22: #{tpu_custom_call.1} parent=1 // pred_check
      _
    $region23: #{tpu_custom_call.1} parent=1 // pred_check_branch
      %90 = sbr.rel (%p84) target = $region25
    $region24: #{tpu_custom_call.1} parent=1 // pred_region
      %v91 = vld [vmem:[#allocation2] sm:$0xff]
      %v92 = vld [vmem:[#allocation2 + $0x8] sm:$0xff]
      %v93 = vld [vmem:[#allocation2 + $0x10] sm:$0xff]
      %v94 = vld [vmem:[#allocation2 + $0x18] sm:$0xff]
      %v95 = vld [vmem:[#allocation5] sm:$0xff]
      %v96 = vld [vmem:[#allocation5 + $0x8] sm:$0xff]
      %v97 = vld [vmem:[#allocation5 + $0x10] sm:$0xff]
      %v98 = vld [vmem:[#allocation5 + $0x18] sm:$0xff]
      %v99 = vmul.f32 %v91, 0.5
      %v100 = vmul.f32 %v92, 0.5
      %v101 = vmul.f32 %v93, 0.5
      %v102 = vmul.f32 %v94, 0.5
      %v103 = vtanh.pop %v99
      %v104 = vtanh.pop %v100
      %v105 = vtanh.pop %v101
      %v106 = vtanh.pop %v102
      %v107 = vmul.f32 %v103, 0.5
      %v108 = vmul.f32 %v104, 0.5
      %v109 = vmul.f32 %v105, 0.5
      %v110 = vmul.f32 %v106, 0.5
      %v111 = vadd.f32 %v107, 0.5
      %v112 = vadd.f32 %v108, 0.5
      %v113 = vadd.f32 %v109, 0.5
      %v114 = vadd.f32 %v110, 0.5
      %v115 = vld [vmem:[#allocation7] sm:$0xff]
      %v116 = vmul.f32 %v111, %v95
      %v117 = vmul.f32 %v112, %v96
      %v118 = vmul.f32 %v113, %v97
      %v119 = vmul.f32 %v114, %v98
      %v120 = vadd.f32 %v116, %v117
      %v121 = vadd.f32 %v120, %v118
      %v122 = vadd.f32 %v121, %v119
      %v123 = vadd.f32 %v115, %v122
      %124 = vst [vmem:[#allocation7] sm:$0xff] %v123
      %s125 = scalar_lea.vmem [#allocation7], 8
      %v126 = vld [vmem:[%s125] sm:$0xff]
      %v127 = vadd.f32 %v111, %v112
      %v128 = vadd.f32 %v127, %v113
      %v129 = vadd.f32 %v128, %v114
      %v130 = vadd.f32 %v126, %v129
      %131 = vst [vmem:[%s125] sm:$0xff] %v130
      %s132 = scalar_lea.vmem [#allocation7], 16
      %v133 = vld [vmem:[%s132] sm:$0xff]
      %v134 = vadd.f32 %v95, %v96
      %v135 = vadd.f32 %v134, %v97
      %v136 = vadd.f32 %v135, %v98
      %v137 = vadd.f32 %v133, %v136
      %138 = vst [vmem:[%s132] sm:$0xff] %v137
    $region25: #{tpu_custom_call.1} parent=1 // pred_fallthru
      _
    // Predicated region
    $region26: #{tpu_custom_call.1} parent=1 // pred_check
      _
    $region27: #{tpu_custom_call.1} parent=1 // pred_check_branch
      %140 = sbr.rel (%p87) target = $region29
    $region28: #{tpu_custom_call.1} parent=1 // pred_region
      %v141 = vld [vmem:[#allocation2] sm:$0xff]
      %v142 = vld [vmem:[#allocation2 + $0x8] sm:$0xff]
      %v143 = vld [vmem:[#allocation2 + $0x10] sm:$0xff]
      %v144 = vld [vmem:[#allocation2 + $0x18] sm:$0xff]
      %v145 = vld [vmem:[#allocation5] sm:$0xff]
      %v146 = vld [vmem:[#allocation5 + $0x8] sm:$0xff]
      %v147 = vld [vmem:[#allocation5 + $0x10] sm:$0xff]
      %v148 = vld [vmem:[#allocation5 + $0x18] sm:$0xff]
      %v149 = vlaneseq
      %v150 = vshrl.u32 %v149, 7
      %v151 = vadd.s32 %v150, 8
      %v152 = vadd.s32 %v150, 16
      %v153 = vadd.s32 %v150, 24
      %v154 = vlaneseq
      %v155 = vand.u32 %v154, 127
      %s156 = smul.u32 %s79, 32
      %v157 = vstv %s156
      %v158 = vadd.s32 %v157, %v150
      %v159 = vadd.s32 %v157, %v151
      %v160 = vadd.s32 %v157, %v152
      %v161 = vadd.s32 %v157, %v153
      %v162 = vmul.u32 %v158, 128
      %v163 = vmul.u32 %v159, 128
      %v164 = vmul.u32 %v160, 128
      %v165 = vmul.u32 %v161, 128
      %v166 = vadd.s32 %v162, %v155
      %v167 = vadd.s32 %v163, %v155
      %v168 = vadd.s32 %v164, %v155
      %v169 = vadd.s32 %v165, %v155
      %vm170 = vcmp.lt.s32.totalorder %v166, 2048
      %vm171 = vcmp.lt.s32.totalorder %v167, 2048
      %vm172 = vcmp.lt.s32.totalorder %v168, 2048
      %vm173 = vcmp.lt.s32.totalorder %v169, 2048
      %v174 = vmul.f32 %v141, 0.5
      %v175 = vmul.f32 %v142, 0.5
      %v176 = vmul.f32 %v143, 0.5
      %v177 = vmul.f32 %v144, 0.5
      %v178 = vtanh.pop %v174
      %v179 = vtanh.pop %v175
      %v180 = vtanh.pop %v176
      %v181 = vtanh.pop %v177
      %v182 = vmul.f32 %v178, 0.5
      %v183 = vmul.f32 %v179, 0.5
      %v184 = vmul.f32 %v180, 0.5
      %v185 = vmul.f32 %v181, 0.5
      %v186 = vadd.f32 %v182, 0.5
      %v187 = vadd.f32 %v183, 0.5
      %v188 = vadd.f32 %v184, 0.5
      %v189 = vadd.f32 %v185, 0.5
      %v190 = vsel %vm170, %v186, 0.0
      %v191 = vsel %vm171, %v187, 0.0
      %v192 = vsel %vm172, %v188, 0.0
      %v193 = vsel %vm173, %v189, 0.0
      %v194 = vsel %vm170, %v145, 0.0
      %v195 = vsel %vm171, %v146, 0.0
      %v196 = vsel %vm172, %v147, 0.0
      %v197 = vsel %vm173, %v148, 0.0
      %v198 = vld [vmem:[#allocation7] sm:$0xff]
      %v199 = vmul.f32 %v190, %v194
      %v200 = vmul.f32 %v191, %v195
      %v201 = vmul.f32 %v192, %v196
      %v202 = vmul.f32 %v193, %v197
      %v203 = vadd.f32 %v199, %v200
      %v204 = vadd.f32 %v203, %v201
      %v205 = vadd.f32 %v204, %v202
      %v206 = vadd.f32 %v198, %v205
      %207 = vst [vmem:[#allocation7] sm:$0xff] %v206
      %s208 = scalar_lea.vmem [#allocation7], 8
      %v209 = vld [vmem:[%s208] sm:$0xff]
      %v210 = vadd.f32 %v190, %v191
      %v211 = vadd.f32 %v210, %v192
      %v212 = vadd.f32 %v211, %v193
      %v213 = vadd.f32 %v209, %v212
      %214 = vst [vmem:[%s208] sm:$0xff] %v213
      %s215 = scalar_lea.vmem [#allocation7], 16
      %v216 = vld [vmem:[%s215] sm:$0xff]
      %v217 = vadd.f32 %v194, %v195
      %v218 = vadd.f32 %v217, %v196
      %v219 = vadd.f32 %v218, %v197
      %v220 = vadd.f32 %v216, %v219
      %221 = vst [vmem:[%s215] sm:$0xff] %v220
    $region29: #{tpu_custom_call.1} parent=1 // pred_fallthru
      _
    // Predicated region
    $region30: #{tpu_custom_call.1} parent=1 // pred_check
      _
    $region31: #{tpu_custom_call.1} parent=1 // pred_check_branch
      %223 = sbr.rel (0) target = $region33
    $region32: #{tpu_custom_call.1} parent=1 // pred_region
      %s225 = ssub.s32 384, 384
      %226 = vsyncadd [#allocation4], %s225
      %s227 = sshll.u32 [#allocation7], 4
      %s228 = int_to_ptr.vmem [resolvable:$true] %s227
      %233 = dma.vmem_to_hbm [thread:$0]  %s228, 384, %s2, [#allocation4], 128, 128, 8
    $region33: #{tpu_custom_call.1} parent=1 // pred_fallthru
      _
    // Predicated region
    $region34: #{tpu_custom_call.1} parent=1 // pred_check
      _
    $region35: #{tpu_custom_call.1} parent=1 // pred_check_branch
      %235 = sbr.rel (0) target = $region37
    $region36: #{tpu_custom_call.1} parent=1 // pred_region
      %236 = dma.done [#allocation4], 384
    $region37: #{tpu_custom_call.1} parent=1 // pred_fallthru
      _
    %237 = vsyncpa [#allocation3], 1
    %238 = vsyncpa [#allocation6], 1
    %239 = vsyncpa [#allocation4], 1

</llo_original>
